<compile_context>
chip_gen: v5e
topology: v5e:2x2
jax: 0.10.0
libtpu: 0.0.40
codegen_flags: <defaults>
</compile_context>

<pallas_src>
import functools

import jax
import jax.numpy as jnp
from jax.experimental import pallas as pl
from jax.experimental.pallas import tpu as pltpu


def _mlp_kernel(obs_ref, act_ref, w1o_ref, w1a_ref, b1_ref,
                w2_ref, b2_ref, w3_ref, b3_ref, o_ref):
    """Fused 3-layer MLP on one batch tile; the input concat is fused via a split W1."""
    wdt = w1o_ref.dtype

    # Layer 1:  cat([obs, act]) @ W1  ==  obs @ W1_obs + act @ W1_act
    pre = jnp.dot(obs_ref[...].astype(wdt), w1o_ref[...],
                  preferred_element_type=jnp.float32)
    pre = pre + jnp.dot(act_ref[...].astype(wdt), w1a_ref[...],
                        preferred_element_type=jnp.float32)
    h = jnp.tanh(pre + b1_ref[...].astype(jnp.float32))

    # Layer 2 (hidden stays in VMEM; cast back to weight dtype for the MXU).
    h = jnp.tanh(
        jnp.dot(h.astype(w2_ref.dtype), w2_ref[...],
                preferred_element_type=jnp.float32)
        + b2_ref[...].astype(jnp.float32))

    # Output head.
    logits = (
        jnp.dot(h.astype(w3_ref.dtype), w3_ref[...],
                preferred_element_type=jnp.float32)
        + b3_ref[...].astype(jnp.float32))
    o_ref[...] = logits.astype(o_ref.dtype)


def _round_up(x, m):
    return (x + m - 1) // m * m


@functools.partial(jax.jit, static_argnames=("block_b",))
def discriminator_forward(obss, acts, params, *, block_b=512):
    """Fused discriminator forward.

    obss: (B, ...) -> flattened to (B, obs_dim); acts: (B, action_dim).
    block_b: batch-tile rows per grid step.  Large (512-2048) amortises the
    per-step grid overhead; on v7x keep it small enough that the grid has
    >= 2 steps so both TensorCores get work (dimension_semantics=("parallel",)).
    """
    w1_obs, w1_act, b1, w2, b2, w3, b3 = params
    batch = obss.shape[0]
    obss = obss.reshape(batch, -1)                 # Flatten (matches the module)
    obs_dim = obss.shape[-1]
    act_dim = acts.shape[-1]
    hidden = w2.shape[-1]
    out_dim = w3.shape[-1]

    # Clamp the tile to the (8-aligned) batch, then pad the batch to a tile
    # multiple.  Padded rows compute on zeros and are sliced off at the end.
    block_b = max(8, min(block_b, _round_up(batch, 8)))
    num_tiles = pl.cdiv(batch, block_b)
    padded = num_tiles * block_b
    if padded != batch:
        obss = jnp.pad(obss, ((0, padded - batch), (0, 0)))
        acts = jnp.pad(acts, ((0, padded - batch), (0, 0)))

    def rep(rows, cols):
        # Grid-invariant operand: constant index_map -> fetched once and reused
        # across all grid steps (no per-step re-copy).
        return pl.BlockSpec((rows, cols), lambda i: (0, 0))

    out = pl.pallas_call(
        _mlp_kernel,
        out_shape=jax.ShapeDtypeStruct((padded, out_dim), jnp.float32),
        grid=(num_tiles,),
        in_specs=[
            pl.BlockSpec((block_b, obs_dim), lambda i: (i, 0)),   # obs tile
            pl.BlockSpec((block_b, act_dim), lambda i: (i, 0)),   # act tile
            rep(obs_dim, hidden),     # W1_obs
            rep(act_dim, hidden),     # W1_act
            rep(1, hidden),           # b1
            rep(hidden, hidden),      # W2
            rep(1, hidden),           # b2
            rep(hidden, out_dim),     # W3
            rep(1, out_dim),          # b3
        ],
        out_specs=pl.BlockSpec((block_b, out_dim), lambda i: (i, 0)),
        compiler_params=pltpu.CompilerParams(
            dimension_semantics=("parallel",)),
    )(obss, acts, w1_obs, w1_act, b1, w2, b2, w3, b3)
    return out[:batch]


def init_params(key, obs_dim, action_dim, hidden, out_dim, dtype=jnp.float32):
    """nn.Linear-style U(-1/sqrt(fan_in), 1/sqrt(fan_in)) init.

    Returns (kernel_params, reference_params).  Kernel params carry W1 split
    into obs / act slabs so the kernel fuses the concat; use dtype=jnp.bfloat16
    on v6e/v7x to halve weight/activation DMA bytes.
    """
    ks = jax.random.split(key, 6)

    def lin(kw, kb, fan_in, fan_out):
        bound = 1.0 / jnp.sqrt(float(fan_in))
        w = jax.random.uniform(kw, (fan_in, fan_out), jnp.float32, -bound, bound)
        b = jax.random.uniform(kb, (1, fan_out), jnp.float32, -bound, bound)
        return w.astype(dtype), b.astype(dtype)

    in_dim = obs_dim + action_dim
    w1, b1 = lin(ks[0], ks[1], in_dim, hidden)
    w2, b2 = lin(ks[2], ks[3], hidden, hidden)
    w3, b3 = lin(ks[4], ks[5], hidden, out_dim)
    kernel_params = (w1[:obs_dim], w1[obs_dim:], b1, w2, b2, w3, b3)
    reference_params = (w1, b1, w2, b2, w3, b3)
    return kernel_params, reference_params


def _reference_forward(obss, acts, ref_params):
    """Pure-JAX reference matching the PyTorch forward."""
    w1, b1, w2, b2, w3, b3 = ref_params
    b = obss.shape[0]
    x = jnp.concatenate([obss.reshape(b, -1), acts], axis=-1)
    h = jnp.tanh(x @ w1 + b1)
    h = jnp.tanh(h @ w2 + b2)
    return h @ w3 + b3


if __name__ == "__main__":
    key = jax.random.PRNGKey(0)
    k_obs, k_act, k_par, k_obs2, k_act2 = jax.random.split(key, 5)

    obs_dim, action_dim, hidden, output_dim = 12, 4, 32, 3
    kparams, rparams = init_params(k_par, obs_dim, action_dim, hidden, output_dim)

    # Small, non-multiple-of-8 batch: exercises the pad-and-slice path.
    batch = 10
    obss = jax.random.normal(k_obs, (batch, obs_dim), jnp.float32)
    acts = jax.random.normal(k_act, (batch, action_dim), jnp.float32)
    out = jax.block_until_ready(discriminator_forward(obss, acts, kparams))
    ref = _reference_forward(obss, acts, rparams)
    assert out.shape == (batch, output_dim)
    assert jnp.allclose(out, ref, atol=5e-5, rtol=5e-5), "mismatch (small batch)"

    # Larger batch with a multi-tile grid plus padding (300 -> 3 tiles of 128).
    batch2 = 300
    obss2 = jax.random.normal(k_obs2, (batch2, obs_dim), jnp.float32)
    acts2 = jax.random.normal(k_act2, (batch2, action_dim), jnp.float32)
    out2 = jax.block_until_ready(
        discriminator_forward(obss2, acts2, kparams, block_b=128))
    ref2 = _reference_forward(obss2, acts2, rparams)
    assert out2.shape == (batch2, output_dim)
    assert jnp.allclose(out2, ref2, atol=5e-5, rtol=5e-5), "mismatch (multi-tile)"

    print("KERNEL_OK")
</pallas_src>

<mosaic_0001>
module attributes {stable_mosaic.version = 11 : i64} {
  func.func @_mlp_kernel(%arg0: i32, %arg1: memref<16x12xf32, #tpu.memory_space<vmem>>, %arg2: memref<16x4xf32, #tpu.memory_space<vmem>>, %arg3: memref<12x32xf32, #tpu.memory_space<vmem>>, %arg4: memref<4x32xf32, #tpu.memory_space<vmem>>, %arg5: memref<1x32xf32, #tpu.memory_space<vmem>>, %arg6: memref<32x32xf32, #tpu.memory_space<vmem>>, %arg7: memref<1x32xf32, #tpu.memory_space<vmem>>, %arg8: memref<32x3xf32, #tpu.memory_space<vmem>>, %arg9: memref<1x3xf32, #tpu.memory_space<vmem>>, %arg10: memref<16x3xf32, #tpu.memory_space<vmem>>) attributes {dimension_semantics = [#tpu.dimension_semantics<parallel>], iteration_bounds = array<i64: 1>, scalar_prefetch = 0 : i64, scratch_operands = 0 : i64, tpu.core_type = #tpu.core_type<tc>, window_params = [{transform_indices = @transform_0, window_bounds = array<i64: 16, 12>}, {transform_indices = @transform_1, window_bounds = array<i64: 16, 4>}, {pipeline_mode = #tpu.pipeline_mode<synchronous>, transform_indices = @transform_2, window_bounds = array<i64: 12, 32>}, {pipeline_mode = #tpu.pipeline_mode<synchronous>, transform_indices = @transform_3, window_bounds = array<i64: 4, 32>}, {pipeline_mode = #tpu.pipeline_mode<synchronous>, transform_indices = @transform_4, window_bounds = array<i64: 1, 32>}, {pipeline_mode = #tpu.pipeline_mode<synchronous>, transform_indices = @transform_5, window_bounds = array<i64: 32, 32>}, {pipeline_mode = #tpu.pipeline_mode<synchronous>, transform_indices = @transform_6, window_bounds = array<i64: 1, 32>}, {pipeline_mode = #tpu.pipeline_mode<synchronous>, transform_indices = @transform_7, window_bounds = array<i64: 32, 3>}, {pipeline_mode = #tpu.pipeline_mode<synchronous>, transform_indices = @transform_8, window_bounds = array<i64: 1, 3>}, {transform_indices = @transform_9, window_bounds = array<i64: 16, 3>}]} {
    %c0 = arith.constant 0 : index
    %c0_0 = arith.constant 0 : index
    %0 = vector.load %arg1[%c0, %c0_0] : memref<16x12xf32, #tpu.memory_space<vmem>>, vector<16x12xf32>
    %c0_1 = arith.constant 0 : index
    %c0_2 = arith.constant 0 : index
    %1 = vector.load %arg3[%c0_1, %c0_2] : memref<12x32xf32, #tpu.memory_space<vmem>>, vector<12x32xf32>
    %cst = arith.constant dense<0.000000e+00> : vector<16x32xf32>
    %2 = tpu.matmul %0, %1, %cst {dimension_numbers = #tpu.dot_dimension_numbers<[1], [0], [0], [1], [0, 0, 1, 1], [], []>} : vector<16x12xf32>, vector<12x32xf32>, vector<16x32xf32> -> vector<16x32xf32>
    %c0_3 = arith.constant 0 : index
    %c0_4 = arith.constant 0 : index
    %3 = vector.load %arg2[%c0_3, %c0_4] : memref<16x4xf32, #tpu.memory_space<vmem>>, vector<16x4xf32>
    %c0_5 = arith.constant 0 : index
    %c0_6 = arith.constant 0 : index
    %4 = vector.load %arg4[%c0_5, %c0_6] : memref<4x32xf32, #tpu.memory_space<vmem>>, vector<4x32xf32>
    %cst_7 = arith.constant dense<0.000000e+00> : vector<16x32xf32>
    %5 = tpu.matmul %3, %4, %cst_7 {dimension_numbers = #tpu.dot_dimension_numbers<[1], [0], [0], [1], [0, 0, 1, 1], [], []>} : vector<16x4xf32>, vector<4x32xf32>, vector<16x32xf32> -> vector<16x32xf32>
    %6 = arith.addf %2, %5 : vector<16x32xf32>
    %c0_8 = arith.constant 0 : index
    %c0_9 = arith.constant 0 : index
    %7 = vector.load %arg5[%c0_8, %c0_9] : memref<1x32xf32, #tpu.memory_space<vmem>>, vector<1x32xf32>
    %8 = vector.broadcast %7 : vector<1x32xf32> to vector<16x32xf32>
    %9 = arith.addf %6, %8 : vector<16x32xf32>
    %10 = math.tanh %9 : vector<16x32xf32>
    %c0_10 = arith.constant 0 : index
    %c0_11 = arith.constant 0 : index
    %11 = vector.load %arg6[%c0_10, %c0_11] : memref<32x32xf32, #tpu.memory_space<vmem>>, vector<32x32xf32>
    %cst_12 = arith.constant dense<0.000000e+00> : vector<16x32xf32>
    %12 = tpu.matmul %10, %11, %cst_12 {dimension_numbers = #tpu.dot_dimension_numbers<[1], [0], [0], [1], [0, 0, 1, 1], [], []>} : vector<16x32xf32>, vector<32x32xf32>, vector<16x32xf32> -> vector<16x32xf32>
    %c0_13 = arith.constant 0 : index
    %c0_14 = arith.constant 0 : index
    %13 = vector.load %arg7[%c0_13, %c0_14] : memref<1x32xf32, #tpu.memory_space<vmem>>, vector<1x32xf32>
    %14 = vector.broadcast %13 : vector<1x32xf32> to vector<16x32xf32>
    %15 = arith.addf %12, %14 : vector<16x32xf32>
    %16 = math.tanh %15 : vector<16x32xf32>
    %c0_15 = arith.constant 0 : index
    %c0_16 = arith.constant 0 : index
    %17 = vector.load %arg8[%c0_15, %c0_16] : memref<32x3xf32, #tpu.memory_space<vmem>>, vector<32x3xf32>
    %cst_17 = arith.constant dense<0.000000e+00> : vector<16x3xf32>
    %18 = tpu.matmul %16, %17, %cst_17 {dimension_numbers = #tpu.dot_dimension_numbers<[1], [0], [0], [1], [0, 0, 1, 1], [], []>} : vector<16x32xf32>, vector<32x3xf32>, vector<16x3xf32> -> vector<16x3xf32>
    %c0_18 = arith.constant 0 : index
    %c0_19 = arith.constant 0 : index
    %19 = vector.load %arg9[%c0_18, %c0_19] : memref<1x3xf32, #tpu.memory_space<vmem>>, vector<1x3xf32>
    %20 = vector.broadcast %19 : vector<1x3xf32> to vector<16x3xf32>
    %21 = arith.addf %18, %20 : vector<16x3xf32>
    %c0_20 = arith.constant 0 : index
    %c0_21 = arith.constant 0 : index
    %22 = vector.load %arg10[%c0_20, %c0_21] : memref<16x3xf32, #tpu.memory_space<vmem>>, vector<16x3xf32>
    tpu.vector_store %arg10[%c0_20, %c0_21], %21 {strides = array<i32>} : memref<16x3xf32, #tpu.memory_space<vmem>>, vector<16x3xf32>,
    return
  }
  func.func @transform_0(%arg0: i32) -> (i32, i32) {
    %c0_i32 = arith.constant 0 : i32
    %c0_i32_0 = arith.constant 0 : i32
    return %arg0, %c0_i32 : i32, i32
  }
  func.func @transform_1(%arg0: i32) -> (i32, i32) {
    %c0_i32 = arith.constant 0 : i32
    %c0_i32_0 = arith.constant 0 : i32
    return %arg0, %c0_i32 : i32, i32
  }
  func.func @transform_2(%arg0: i32) -> (i32, i32) {
    %c0_i32 = arith.constant 0 : i32
    %c0_i32_0 = arith.constant 0 : i32
    %c0_i32_1 = arith.constant 0 : i32
    return %c0_i32, %c0_i32_0 : i32, i32
  }
  func.func @transform_3(%arg0: i32) -> (i32, i32) {
    %c0_i32 = arith.constant 0 : i32
    %c0_i32_0 = arith.constant 0 : i32
    %c0_i32_1 = arith.constant 0 : i32
    return %c0_i32, %c0_i32_0 : i32, i32
  }
  func.func @transform_4(%arg0: i32) -> (i32, i32) {
    %c0_i32 = arith.constant 0 : i32
    %c0_i32_0 = arith.constant 0 : i32
    %c0_i32_1 = arith.constant 0 : i32
    return %c0_i32, %c0_i32_0 : i32, i32
  }
  func.func @transform_5(%arg0: i32) -> (i32, i32) {
    %c0_i32 = arith.constant 0 : i32
    %c0_i32_0 = arith.constant 0 : i32
    %c0_i32_1 = arith.constant 0 : i32
    return %c0_i32, %c0_i32_0 : i32, i32
  }
  func.func @transform_6(%arg0: i32) -> (i32, i32) {
    %c0_i32 = arith.constant 0 : i32
    %c0_i32_0 = arith.constant 0 : i32
    %c0_i32_1 = arith.constant 0 : i32
    return %c0_i32, %c0_i32_0 : i32, i32
  }
  func.func @transform_7(%arg0: i32) -> (i32, i32) {
    %c0_i32 = arith.constant 0 : i32
    %c0_i32_0 = arith.constant 0 : i32
    %c0_i32_1 = arith.constant 0 : i32
    return %c0_i32, %c0_i32_0 : i32, i32
  }
  func.func @transform_8(%arg0: i32) -> (i32, i32) {
    %c0_i32 = arith.constant 0 : i32
    %c0_i32_0 = arith.constant 0 : i32
    %c0_i32_1 = arith.constant 0 : i32
    return %c0_i32, %c0_i32_0 : i32, i32
  }
  func.func @transform_9(%arg0: i32) -> (i32, i32) {
    %c0_i32 = arith.constant 0 : i32
    %c0_i32_0 = arith.constant 0 : i32
    return %arg0, %c0_i32 : i32, i32
  }
}

</mosaic_0001>

<llo_original>
// kernel: discriminator_forward.1
$region0: #{discriminator_forward.1}
  #allocation0 [shape = 'u32[]', space=smem, size = 0x4, offset = 0x4, fixed_abs, tag = 'smem constant byte address 0x4 - core index']
  #allocation1 [shape = 'u32[72,128]{1,0:T(1,128)}', space=vmem, size = 0x9000, scoped, tag = 'internal scratch']
  %s0 = inlined_call_operand.vmem [shape: f32[16,12], index: 0, kind: input, shape index: {}]
  %s1 = inlined_call_operand.vmem [shape: f32[16,4], index: 1, kind: input, shape index: {}]
  %s2 = inlined_call_operand.vmem [shape: f32[12,32], index: 2, kind: input, shape index: {}]
  %s3 = inlined_call_operand.vmem [shape: f32[4,32], index: 3, kind: input, shape index: {}]
  %s4 = inlined_call_operand.vmem [shape: f32[1,32], index: 4, kind: input, shape index: {}]
  %s5 = inlined_call_operand.vmem [shape: f32[32,32], index: 5, kind: input, shape index: {}]
  %s6 = inlined_call_operand.vmem [shape: f32[1,32], index: 6, kind: input, shape index: {}]
  %s7 = inlined_call_operand.vmem [shape: f32[32,3], index: 7, kind: input, shape index: {}]
  %s8 = inlined_call_operand.vmem [shape: f32[1,3], index: 8, kind: input, shape index: {}]
  %s9 = inlined_call_operand.vmem [shape: f32[16,3], index: 9, kind: output, shape index: {}]
  %s10 = sld [smem:[#allocation0]]
  $region46: #{discriminator_forward.1} parent=0
    _
  %s12 = ssub.s32 1, %s10
  %s13 = scalar_select 0, %s12, %s10
  // Predicated region
  $region2: #{discriminator_forward.1} parent=0 // pred_check
    _
  $region3: #{discriminator_forward.1} parent=0 // pred_check_branch
    %15 = sbr.rel (0) target = $region5
  $region4: #{discriminator_forward.1} parent=0 // pred_region
    _
  $region5: #{discriminator_forward.1} parent=0 // pred_fallthru
    _
  // Predicated region
  $region6: #{discriminator_forward.1} parent=0 // pred_check
    _
  $region7: #{discriminator_forward.1} parent=0 // pred_check_branch
    %17 = sbr.rel (0) target = $region9
  $region8: #{discriminator_forward.1} parent=0 // pred_region
    _
  $region9: #{discriminator_forward.1} parent=0 // pred_fallthru
    _
  // Predicated region
  $region10: #{discriminator_forward.1} parent=0 // pred_check
    _
  $region11: #{discriminator_forward.1} parent=0 // pred_check_branch
    %19 = sbr.rel (0) target = $region13
  $region12: #{discriminator_forward.1} parent=0 // pred_region
    _
  $region13: #{discriminator_forward.1} parent=0 // pred_fallthru
    _
  // Predicated region
  $region14: #{discriminator_forward.1} parent=0 // pred_check
    _
  $region15: #{discriminator_forward.1} parent=0 // pred_check_branch
    %21 = sbr.rel (0) target = $region17
  $region16: #{discriminator_forward.1} parent=0 // pred_region
    _
  $region17: #{discriminator_forward.1} parent=0 // pred_fallthru
    _
  // Predicated region
  $region18: #{discriminator_forward.1} parent=0 // pred_check
    _
  $region19: #{discriminator_forward.1} parent=0 // pred_check_branch
    %23 = sbr.rel (0) target = $region21
  $region20: #{discriminator_forward.1} parent=0 // pred_region
    _
  $region21: #{discriminator_forward.1} parent=0 // pred_fallthru
    _
  // Predicated region
  $region22: #{discriminator_forward.1} parent=0 // pred_check
    _
  $region23: #{discriminator_forward.1} parent=0 // pred_check_branch
    %25 = sbr.rel (0) target = $region25
  $region24: #{discriminator_forward.1} parent=0 // pred_region
    _
  $region25: #{discriminator_forward.1} parent=0 // pred_fallthru
    _
  // Predicated region
  $region26: #{discriminator_forward.1} parent=0 // pred_check
    _
  $region27: #{discriminator_forward.1} parent=0 // pred_check_branch
    %27 = sbr.rel (0) target = $region29
  $region28: #{discriminator_forward.1} parent=0 // pred_region
    _
  $region29: #{discriminator_forward.1} parent=0 // pred_fallthru
    _
  // Predicated region
  $region30: #{discriminator_forward.1} parent=0 // pred_check
    _
  $region31: #{discriminator_forward.1} parent=0 // pred_check_branch
    %29 = sbr.rel (0) target = $region33
  $region32: #{discriminator_forward.1} parent=0 // pred_region
    _
  $region33: #{discriminator_forward.1} parent=0 // pred_fallthru
    _
  // Predicated region
  $region34: #{discriminator_forward.1} parent=0 // pred_check
    _
  $region35: #{discriminator_forward.1} parent=0 // pred_check_branch
    %31 = sbr.rel (0) target = $region37
  $region36: #{discriminator_forward.1} parent=0 // pred_region
    _
  $region37: #{discriminator_forward.1} parent=0 // pred_fallthru
    _
  %v32 = vld [vmem:[%s0] sm:$0xff]
  %v33 = vld [vmem:[%s0 + $0x8] sm:$0xff]
  %v34 = vld [vmem:[%s2] sm:$0xff]
  %v35 = vld [vmem:[%s2 + $0x8] sm:$0xf]
  %v36 = vld [vmem:[%s1] sm:$0xff]
  %v37 = vld [vmem:[%s1 + $0x8] sm:$0xff]
  %v38 = vld [vmem:[%s3] sm:$0xf]
  %vm39 = vcmask 31744
  %v41 = vsel %vm39, %v36, 0
  %v44 = vsel %vm39, %v37, 0
  %vm46 = vcmask 1043456
  %v48 = vsel %vm46, %v38, 0
  %50 = vmatpush.msra.mxu0 0.0
  %51 = vmatpush.msra.mxu0 0.0
  %52 = vmatpush.msra.mxu0 0.0
  %53 = vmatpush.msra.mxu0 0.0
  %54 = vmatpush.msra.mxu0 0.0
  %55 = vmatpush.msra.mxu0 0.0
  %56 = vmatpush.msra.mxu0 0.0
  %57 = vmatpush.msra.mxu0 0.0
  %58 = vmatpush.msra.mxu0 0.0
  %59 = vmatpush.msra.mxu0 0.0
  %60 = vmatpush.msra.mxu0 0.0
  %61 = vmatpush.msra.mxu0 0.0
  %62 = vmatpush.msra.mxu0 0.0
  %63 = vmatpush.msra.mxu0 0.0
  %64 = vmatpush.msra.mxu0 0.0
  %65 = vmatpush.msra.mxu0 %v48
  %66 = vmatmul.f32.gmra.mxu0 %v41
  %v67 = vpop.f32.mrf.mxu0
  %v68 = vadd.f32 0.0, %v67
  %69 = vmatmul.f32.gmra.mxu0 %v44
  %v70 = vpop.f32.mrf.mxu0
  %v71 = vadd.f32 0.0, %v70
  %72 = vdwg.mxu0
  %vm73 = vcmask 97280
  %v75 = vsel %vm73, %v32, 0
  %v78 = vsel %vm73, %v33, 0
  %v81 = vsel %vm46, %v35, 0
  %83 = vmatpush.msra.mxu0 0.0
  %84 = vmatpush.msra.mxu0 0.0
  %85 = vmatpush.msra.mxu0 0.0
  %86 = vmatpush.msra.mxu0 0.0
  %87 = vmatpush.msra.mxu0 0.0
  %88 = vmatpush.msra.mxu0 0.0
  %89 = vmatpush.msra.mxu0 0.0
  %90 = vmatpush.msra.mxu0 0.0
  %91 = vmatpush.msra.mxu0 0.0
  %92 = vmatpush.msra.mxu0 0.0
  %93 = vmatpush.msra.mxu0 0.0
  %94 = vmatpush.msra.mxu0 0.0
  %95 = vmatpush.msra.mxu0 0.0
  %96 = vmatpush.msra.mxu0 0.0
  %97 = vmatpush.msra.mxu0 %v81
  %98 = vmatpush.msra.mxu0 %v34
  %99 = vmatmul.f32.gmra.mxu0 %v75
  %v100 = vpop.f32.mrf.mxu0
  %v101 = vadd.f32 %v68, %v100
  %102 = vmatmul.f32.gmra.mxu0 %v78
  %v103 = vpop.f32.mrf.mxu0
  %v104 = vadd.f32 %v71, %v103
  %105 = vdwg.mxu0
  %v106 = vld [vmem:[%s4] sm:$0x1]
  %v108 = vperm.slane %v106, 0
  %v110 = vadd.f32 %v101, %v108
  %v111 = vadd.f32 %v104, %v108
  %v112 = vtanh.pop %v110
  %v113 = vtanh.pop %v111
  %v114 = vld [vmem:[%s5] sm:$0xff]
  %v115 = vld [vmem:[%s5 + $0x8] sm:$0xff]
  %v116 = vld [vmem:[%s5 + $0x10] sm:$0xff]
  %v117 = vld [vmem:[%s5 + $0x18] sm:$0xff]
  %v118 = vld [vmem:[%s6] sm:$0x1]
  %v120 = vperm.slane %v118, 0
  %vm122 = vcmask 261120
  %v124 = vsel %vm122, %v112, 0
  %v127 = vsel %vm122, %v113, 0
  %129 = vmatpush.msra.mxu0 0.0
  %130 = vmatpush.msra.mxu0 0.0
  %131 = vmatpush.msra.mxu0 0.0
  %132 = vmatpush.msra.mxu0 0.0
  %133 = vmatpush.msra.mxu0 0.0
  %134 = vmatpush.msra.mxu0 0.0
  %135 = vmatpush.msra.mxu0 0.0
  %136 = vmatpush.msra.mxu0 0.0
  %137 = vmatpush.msra.mxu0 0.0
  %138 = vmatpush.msra.mxu0 0.0
  %139 = vmatpush.msra.mxu0 0.0
  %140 = vmatpush.msra.mxu0 0.0
  %141 = vmatpush.msra.mxu0 %v117
  %142 = vmatpush.msra.mxu0 %v116
  %143 = vmatpush.msra.mxu0 %v115
  %144 = vmatpush.msra.mxu0 %v114
  %145 = vmatmul.f32.gmra.mxu0 %v124
  %v146 = vpop.f32.mrf.mxu0
  %v147 = vadd.f32 %v120, %v146
  %148 = vmatmul.f32.gmra.mxu0 %v127
  %v149 = vpop.f32.mrf.mxu0
  %v150 = vadd.f32 %v120, %v149
  %151 = vdwg.mxu0
  %v152 = vtanh.pop %v147
  %v153 = vtanh.pop %v150
  %v154 = vld [vmem:[%s7] sm:$0xff]
  %v155 = vld [vmem:[%s7 + $0x8] sm:$0xff]
  %v156 = vld [vmem:[%s7 + $0x10] sm:$0xff]
  %v157 = vld [vmem:[%s7 + $0x18] sm:$0xff]
  %v158 = vld [vmem:[%s8] sm:$0x1]
  %v160 = vperm.slane %v158, 0
  %v163 = vsel %vm122, %v152, 0
  %v166 = vsel %vm122, %v153, 0
  %168 = vmatpush.msra.mxu0 0.0
  %169 = vmatpush.msra.mxu0 0.0
  %170 = vmatpush.msra.mxu0 0.0
  %171 = vmatpush.msra.mxu0 0.0
  %172 = vmatpush.msra.mxu0 0.0
  %173 = vmatpush.msra.mxu0 0.0
  %174 = vmatpush.msra.mxu0 0.0
  %175 = vmatpush.msra.mxu0 0.0
  %176 = vmatpush.msra.mxu0 0.0
  %177 = vmatpush.msra.mxu0 0.0
  %178 = vmatpush.msra.mxu0 0.0
  %179 = vmatpush.msra.mxu0 0.0
  %180 = vmatpush.msra.mxu0 %v157
  %181 = vmatpush.msra.mxu0 %v156
  %182 = vmatpush.msra.mxu0 %v155
  %183 = vmatpush.msra.mxu0 %v154
  %184 = vmatmul.f32.gmra.mxu0 %v163
  %v185 = vpop.f32.mrf.mxu0
  %v186 = vadd.f32 %v160, %v185
  %187 = vmatmul.f32.gmra.mxu0 %v166
  %v188 = vpop.f32.mrf.mxu0
  %v189 = vadd.f32 %v160, %v188
  %190 = vdwg.mxu0
  %vm191 = vcmask 23552
  %192 = vst.msk [vmem:[%s9] sm:$0xff] %vm191, %v186
  %193 = vst.msk [vmem:[%s9 + $0x8] sm:$0xff] %vm191, %v189
  // Predicated region
  $region38: #{discriminator_forward.1} parent=0 // pred_check
    _
  $region39: #{discriminator_forward.1} parent=0 // pred_check_branch
    %195 = sbr.rel (0) target = $region41
  $region40: #{discriminator_forward.1} parent=0 // pred_region
    _
  $region41: #{discriminator_forward.1} parent=0 // pred_fallthru
    _
  // Predicated region
  $region42: #{discriminator_forward.1} parent=0 // pred_check
    _
  $region43: #{discriminator_forward.1} parent=0 // pred_check_branch
    %197 = sbr.rel (0) target = $region45
  $region44: #{discriminator_forward.1} parent=0 // pred_region
    _
  $region45: #{discriminator_forward.1} parent=0 // pred_fallthru
    _

</llo_original>
